<compile_context>
chip_gen: v5e
topology: v5e:2x2
jax: 0.10.0
libtpu: 0.0.40
codegen_flags: <defaults>
</compile_context>

<pallas_src>
import math
import functools

import jax
import jax.numpy as jnp
from jax.experimental import pallas as pl
from jax.experimental.pallas import tpu as pltpu


MATMUL_DTYPE = jnp.bfloat16      # MXU operand dtype; accumulation is always f32
LN_EPS = 1e-5                    # PyTorch nn.LayerNorm default
NEG_INF = -1e9                   # matches masked_fill(mask == 0, -1e9)
ROW_TILE = 512                   # row tile for linear / FFN kernels
COL_TILE = 512                   # output-column tile for linear kernels
Q_TILE = 256                     # query-row tile for the attention kernel
VMEM_LIMIT = 64 * 1024 * 1024    # explicit scoped-VMEM budget (above v5e/v6e defaults)


def _mosaic_params(*semantics):
    return pltpu.CompilerParams(dimension_semantics=tuple(semantics),
                                vmem_limit_bytes=VMEM_LIMIT)


# ----------------------------- Pallas kernels ------------------------------

def _linear_kernel(x_ref, w_ref, b_ref, o_ref):
    # x: (tm, din), w: (din, tn) bf16, b: (1, tn) f32 -> o: (tm, tn) out_dtype
    x = x_ref[...].astype(MATMUL_DTYPE)
    y = jnp.dot(x, w_ref[...], preferred_element_type=jnp.float32) + b_ref[...]
    o_ref[...] = y.astype(o_ref.dtype)


def _ffn_ln_kernel(x_ref, w1_ref, b1_ref, w2_ref, b2_ref, g_ref, bt_ref, o_ref):
    # Fused: y = Linear2(ReLU(Linear1(x))); out = LayerNorm(x + y)
    x = x_ref[...]                                              # (tm, D) f32
    h = jnp.dot(x.astype(MATMUL_DTYPE), w1_ref[...],
                preferred_element_type=jnp.float32) + b1_ref[...]
    h = jnp.maximum(h, 0.0)                                     # ReLU (f32)
    y = jnp.dot(h.astype(MATMUL_DTYPE), w2_ref[...],
                preferred_element_type=jnp.float32) + b2_ref[...]
    z = x + y
    mean = jnp.mean(z, axis=-1, keepdims=True)
    var = jnp.mean((z - mean) ** 2, axis=-1, keepdims=True)
    o_ref[...] = (z - mean) * jax.lax.rsqrt(var + LN_EPS) * g_ref[...] + bt_ref[...]


def _attn_head_kernel(keep_ref, q_ref, k_ref, v_ref, res_ref, wo_ref, bo_ref,
                      g_ref, bt_ref, o_ref, *, scale, causal, q_tile):
    # Grid = (batch, q_tiles, heads).  Heads is the innermost "arbitrary" axis; the
    # output block is used as an f32 accumulator: residual + bo + sum_h attn_h @ Wo_h,
    # LayerNorm'ed on the last head.
    h = pl.program_id(2)
    qi = pl.program_id(1)

    @pl.when(h == 0)
    def _init():
        o_ref[0] = res_ref[0] + bo_ref[...]

    q = q_ref[...]                    # (TQ, dk) bf16
    k = k_ref[...]                    # (Sk, dk) bf16
    v = v_ref[...]                    # (Sk, dk) bf16

    # scores = q @ k^T (contraction expressed via dot_general -> no in-kernel transpose)
    s = jax.lax.dot_general(q, k, (((1,), (1,)), ((), ())),
                            preferred_element_type=jnp.float32) * scale   # (TQ, Sk)

    mask = keep_ref[...] != 0                                             # (1, Sk)
    if causal:
        q_pos = qi * q_tile + jax.lax.broadcasted_iota(jnp.int32, s.shape, 0)
        k_pos = jax.lax.broadcasted_iota(jnp.int32, s.shape, 1)
        mask = mask & (q_pos >= k_pos)
    # Exactly torch's masked_fill(mask == 0, -1e9) (select, not additive bias).
    s = jnp.where(mask, s, NEG_INF)

    s_max = jnp.max(s, axis=-1, keepdims=True)
    e = jnp.exp(s - s_max)
    inv = pl.reciprocal(jnp.sum(e, axis=-1, keepdims=True), approx=True)
    p = (e * inv).astype(MATMUL_DTYPE)

    head_out = jnp.dot(p, v, preferred_element_type=jnp.float32)          # (TQ, dk)
    o_ref[0] += jnp.dot(head_out.astype(MATMUL_DTYPE), wo_ref[...],
                        preferred_element_type=jnp.float32)               # (TQ, D)

    @pl.when(h == pl.num_programs(2) - 1)
    def _finalize():
        z = o_ref[0]
        mean = jnp.mean(z, axis=-1, keepdims=True)
        var = jnp.mean((z - mean) ** 2, axis=-1, keepdims=True)
        o_ref[0] = (z - mean) * jax.lax.rsqrt(var + LN_EPS) * g_ref[...] + bt_ref[...]


# ----------------------------- Pallas wrappers ------------------------------

def pallas_linear(x2d, w, b, *, tm=ROW_TILE, tn=COL_TILE, out_dtype=jnp.float32,
                  deep_buffer_weight=False):
    """Tiled y = x @ w + b.  Rows and output columns are both 'parallel'."""
    n, din = x2d.shape
    dout = w.shape[1]
    tm = min(n, tm)
    tn = min(dout, tn)
    grid = (pl.cdiv(n, tm), pl.cdiv(dout, tn))
    w_kwargs = {}
    if deep_buffer_weight and grid[1] >= 3:
        # Deeper pipelining of the streamed weight (vocab projection is DMA-bound).
        w_kwargs["pipeline_mode"] = pl.Buffered(3)
    return pl.pallas_call(
        _linear_kernel,
        out_shape=jax.ShapeDtypeStruct((n, dout), out_dtype),
        grid=grid,
        in_specs=[
            pl.BlockSpec((tm, din), lambda i, j: (i, 0)),
            pl.BlockSpec((din, tn), lambda i, j: (0, j), **w_kwargs),
            pl.BlockSpec((1, tn), lambda i, j: (0, j)),
        ],
        out_specs=pl.BlockSpec((tm, tn), lambda i, j: (i, j)),
        compiler_params=_mosaic_params("parallel", "parallel"),
    )(x2d, w, b.reshape(1, dout))


def pallas_ffn_ln(x, w1, b1, w2, b2, gamma, beta, *, tm=ROW_TILE):
    """Fused position-wise FFN + residual add + LayerNorm, row-tiled."""
    B, S, D = x.shape
    n = B * S
    d_ff = w1.shape[1]
    tm = min(n, tm)
    # TODO(synk): for very large D*d_ff on v7x (64 MiB VMEM), add a d_ff reduction
    # grid axis + VMEM accumulator instead of keeping w1/w2 fully resident.
    out = pl.pallas_call(
        _ffn_ln_kernel,
        out_shape=jax.ShapeDtypeStruct((n, D), jnp.float32),
        grid=(pl.cdiv(n, tm),),
        in_specs=[
            pl.BlockSpec((tm, D), lambda i: (i, 0)),
            pl.BlockSpec((D, d_ff), lambda i: (0, 0)),
            pl.BlockSpec((1, d_ff), lambda i: (0, 0)),
            pl.BlockSpec((d_ff, D), lambda i: (0, 0)),
            pl.BlockSpec((1, D), lambda i: (0, 0)),
            pl.BlockSpec((1, D), lambda i: (0, 0)),
            pl.BlockSpec((1, D), lambda i: (0, 0)),
        ],
        out_specs=pl.BlockSpec((tm, D), lambda i: (i, 0)),
        compiler_params=_mosaic_params("parallel"),
    )(x.reshape(n, D), w1, b1.reshape(1, d_ff), w2, b2.reshape(1, D),
      gamma.reshape(1, D), beta.reshape(1, D))
    return out.reshape(B, S, D)


def pallas_attention_block(q, k, v, keep_mask, residual, wo, bo, gamma, beta,
                           *, causal, q_tile=Q_TILE):
    """Fused multi-head attention + Wo + residual + LayerNorm.

    q/k/v: (B, H, S, dk) bf16.  keep_mask: (B, 1, Sk) int32 (key-keep).
    Grid = (B, q_tiles, H); output block accumulates across the head axis.
    """
    B, H, Sq, dk = q.shape
    Sk = k.shape[2]
    D = H * dk
    tq = min(Sq, q_tile)
    grid = (B, pl.cdiv(Sq, tq), H)
    kernel = functools.partial(_attn_head_kernel, scale=1.0 / math.sqrt(dk),
                               causal=causal, q_tile=tq)
    return pl.pallas_call(
        kernel,
        out_shape=jax.ShapeDtypeStruct((B, Sq, D), jnp.float32),
        grid=grid,
        in_specs=[
            pl.BlockSpec((None, 1, Sk), lambda b, qi, h: (b, 0, 0)),          # key keep
            pl.BlockSpec((None, None, tq, dk), lambda b, qi, h: (b, h, qi, 0)),  # q
            pl.BlockSpec((None, None, Sk, dk), lambda b, qi, h: (b, h, 0, 0)),   # k
            pl.BlockSpec((None, None, Sk, dk), lambda b, qi, h: (b, h, 0, 0)),   # v
            pl.BlockSpec((1, tq, D), lambda b, qi, h: (b, qi, 0)),            # residual
            pl.BlockSpec((dk, D), lambda b, qi, h: (h, 0)),                   # Wo head slice
            pl.BlockSpec((1, D), lambda b, qi, h: (0, 0)),                    # bo
            pl.BlockSpec((1, D), lambda b, qi, h: (0, 0)),                    # gamma
            pl.BlockSpec((1, D), lambda b, qi, h: (0, 0)),                    # beta
        ],
        out_specs=pl.BlockSpec((1, tq, D), lambda b, qi, h: (b, qi, 0)),
        compiler_params=_mosaic_params("parallel", "parallel", "arbitrary"),
    )(keep_mask, q, k, v, residual, wo, bo.reshape(1, D),
      gamma.reshape(1, D), beta.reshape(1, D))


# ----------------------------- model (glue) ------------------------------

def _split_heads(x, num_heads):
    b, s, d = x.shape
    dk = d // num_heads
    return jnp.transpose(x.reshape(b, s, num_heads, dk), (0, 2, 1, 3))


def mha_block(p, q_in, kv_in, keep_mask, gamma, beta, num_heads, *, fused_qkv, causal):
    """Multi-head attention + W_o + residual + LayerNorm.  Residual is q_in."""
    B, Sq, D = q_in.shape
    if fused_qkv:
        # Fused Q|K|V projection (one matmul), bf16 output (attention consumes bf16).
        qkv = pallas_linear(q_in.reshape(-1, D), p["wqkv"], p["bqkv"],
                            out_dtype=MATMUL_DTYPE).reshape(B, Sq, 3 * D)
        q, k, v = qkv[..., :D], qkv[..., D:2 * D], qkv[..., 2 * D:]
    else:
        Skv = kv_in.shape[1]
        q = pallas_linear(q_in.reshape(-1, D), p["wq"], p["bq"],
                          out_dtype=MATMUL_DTYPE).reshape(B, Sq, D)
        kv = pallas_linear(kv_in.reshape(-1, D), p["wkv"], p["bkv"],
                           out_dtype=MATMUL_DTYPE).reshape(B, Skv, 2 * D)
        k, v = kv[..., :D], kv[..., D:]
    qh = _split_heads(q, num_heads)
    kh = _split_heads(k, num_heads)
    vh = _split_heads(v, num_heads)
    return pallas_attention_block(qh, kh, vh, keep_mask, q_in, p["wo"], p["bo"],
                                  gamma, beta, causal=causal)


def encoder_layer(p, x, src_keep, num_heads):
    x = mha_block(p["self_attn"], x, x, src_keep, p["norm1_g"], p["norm1_b"],
                  num_heads, fused_qkv=True, causal=False)
    x = pallas_ffn_ln(x, p["ff_w1"], p["ff_b1"], p["ff_w2"], p["ff_b2"],
                      p["norm2_g"], p["norm2_b"])
    return x


def decoder_layer(p, x, enc_out, src_keep, tgt_keep, num_heads):
    x = mha_block(p["self_attn"], x, x, tgt_keep, p["norm1_g"], p["norm1_b"],
                  num_heads, fused_qkv=True, causal=True)
    x = mha_block(p["cross_attn"], x, enc_out, src_keep, p["norm2_g"], p["norm2_b"],
                  num_heads, fused_qkv=False, causal=False)
    x = pallas_ffn_ln(x, p["ff_w1"], p["ff_b1"], p["ff_w2"], p["ff_b2"],
                      p["norm3_g"], p["norm3_b"])
    return x


def positional_encoding_table(d_model, max_seq_len):
    pos = jnp.arange(max_seq_len, dtype=jnp.float32)[:, None]
    div = jnp.exp(jnp.arange(0, d_model, 2, dtype=jnp.float32)
                  * -(math.log(10000.0) / d_model))
    pe = jnp.zeros((max_seq_len, d_model), jnp.float32)
    pe = pe.at[:, 0::2].set(jnp.sin(pos * div))
    pe = pe.at[:, 1::2].set(jnp.cos(pos * div))
    return pe


def generate_keep_masks(src, tgt):
    """Thin key-keep masks (B, 1, S) int32; causal mask is built inside the kernel."""
    src_keep = (src != 0).astype(jnp.int32)[:, None, :]
    tgt_keep = (tgt != 0).astype(jnp.int32)[:, None, :]
    return src_keep, tgt_keep


def transformer_forward(params, src, tgt, *, num_heads):
    pe = params["pe"]
    src_keep, tgt_keep = generate_keep_masks(src, tgt)

    src_emb = jnp.take(params["enc_emb"], src, axis=0) + pe[None, : src.shape[1]]
    tgt_emb = jnp.take(params["dec_emb"], tgt, axis=0) + pe[None, : tgt.shape[1]]

    enc_out = src_emb
    for lp in params["enc_layers"]:
        enc_out = encoder_layer(lp, enc_out, src_keep, num_heads)

    dec_out = tgt_emb
    for lp in params["dec_layers"]:
        dec_out = decoder_layer(lp, dec_out, enc_out, src_keep, tgt_keep, num_heads)

    B, S, D = dec_out.shape
    # Final vocab projection tiled over rows x vocab columns, deep weight buffering.
    logits = pallas_linear(dec_out.reshape(-1, D), params["fc_w"], params["fc_b"],
                           deep_buffer_weight=True)
    return logits.reshape(B, S, -1)


# ----------------------------- param init ------------------------------

def _init_linear(key, din, dout, scale=0.1):
    kw, kb = jax.random.split(key)
    return (scale * jax.random.normal(kw, (din, dout), jnp.float32),
            scale * jax.random.normal(kb, (dout,), jnp.float32))


def _init_mha(key, d_model):
    ks = jax.random.split(key, 4)
    wq, bq = _init_linear(ks[0], d_model, d_model)
    wk, bk = _init_linear(ks[1], d_model, d_model)
    wv, bv = _init_linear(ks[2], d_model, d_model)
    wo, bo = _init_linear(ks[3], d_model, d_model)
    # Fused / bf16 weight layouts consumed by the kernels (biases stay f32).
    return dict(
        wqkv=jnp.concatenate([wq, wk, wv], axis=1).astype(MATMUL_DTYPE),
        bqkv=jnp.concatenate([bq, bk, bv], axis=0),
        wq=wq.astype(MATMUL_DTYPE), bq=bq,
        wkv=jnp.concatenate([wk, wv], axis=1).astype(MATMUL_DTYPE),
        bkv=jnp.concatenate([bk, bv], axis=0),
        wo=wo.astype(MATMUL_DTYPE), bo=bo,
    )


def _init_enc_layer(key, d_model, d_ff):
    ks = jax.random.split(key, 3)
    w1, b1 = _init_linear(ks[1], d_model, d_ff)
    w2, b2 = _init_linear(ks[2], d_ff, d_model)
    return dict(
        self_attn=_init_mha(ks[0], d_model),
        ff_w1=w1.astype(MATMUL_DTYPE), ff_b1=b1,
        ff_w2=w2.astype(MATMUL_DTYPE), ff_b2=b2,
        norm1_g=jnp.ones((d_model,)), norm1_b=jnp.zeros((d_model,)),
        norm2_g=jnp.ones((d_model,)), norm2_b=jnp.zeros((d_model,)),
    )


def _init_dec_layer(key, d_model, d_ff):
    ks = jax.random.split(key, 4)
    w1, b1 = _init_linear(ks[2], d_model, d_ff)
    w2, b2 = _init_linear(ks[3], d_ff, d_model)
    return dict(
        self_attn=_init_mha(ks[0], d_model),
        cross_attn=_init_mha(ks[1], d_model),
        ff_w1=w1.astype(MATMUL_DTYPE), ff_b1=b1,
        ff_w2=w2.astype(MATMUL_DTYPE), ff_b2=b2,
        norm1_g=jnp.ones((d_model,)), norm1_b=jnp.zeros((d_model,)),
        norm2_g=jnp.ones((d_model,)), norm2_b=jnp.zeros((d_model,)),
        norm3_g=jnp.ones((d_model,)), norm3_b=jnp.zeros((d_model,)),
    )


def init_transformer(key, src_vocab, tgt_vocab, d_model, num_layers, d_ff, max_seq_len):
    keys = jax.random.split(key, 3 + 2 * num_layers)
    enc_emb = 0.1 * jax.random.normal(keys[0], (src_vocab, d_model), jnp.float32)
    dec_emb = 0.1 * jax.random.normal(keys[1], (tgt_vocab, d_model), jnp.float32)
    fc_w, fc_b = _init_linear(keys[2], d_model, tgt_vocab)
    enc_layers = [_init_enc_layer(keys[3 + i], d_model, d_ff) for i in range(num_layers)]
    dec_layers = [_init_dec_layer(keys[3 + num_layers + i], d_model, d_ff)
                  for i in range(num_layers)]
    return dict(
        enc_emb=enc_emb, dec_emb=dec_emb,
        pe=positional_encoding_table(d_model, max_seq_len),
        enc_layers=enc_layers, dec_layers=dec_layers,
        fc_w=fc_w.astype(MATMUL_DTYPE), fc_b=fc_b,
    )


# ----------------------------- main ------------------------------

if __name__ == "__main__":
    src_vocab = 32
    tgt_vocab = 32
    d_model = 32
    num_heads = 4
    num_layers = 2
    d_ff = 64
    max_seq_length = 16
    batch = 2
    seq = 8

    key = jax.random.PRNGKey(0)
    kp, ks, kt = jax.random.split(key, 3)
    params = init_transformer(kp, src_vocab, tgt_vocab, d_model, num_layers,
                              d_ff, max_seq_length)

    src = jax.random.randint(ks, (batch, seq), 0, src_vocab, dtype=jnp.int32)
    tgt = jax.random.randint(kt, (batch, seq), 0, tgt_vocab, dtype=jnp.int32)

    out = transformer_forward(params, src, tgt, num_heads=num_heads)
    jax.block_until_ready(out)
    assert out.shape == (batch, seq, tgt_vocab), out.shape
    print("KERNEL_OK")
</pallas_src>

<mosaic_0001>
module attributes {stable_mosaic.version = 11 : i64} {
  func.func @_linear_kernel(%arg0: i32, %arg1: i32, %arg2: memref<16x32xf32, #tpu.memory_space<vmem>>, %arg3: memref<32x96xbf16, #tpu.memory_space<vmem>>, %arg4: memref<1x96xf32, #tpu.memory_space<vmem>>, %arg5: memref<16x96xbf16, #tpu.memory_space<vmem>>) attributes {dimension_semantics = [#tpu.dimension_semantics<parallel>, #tpu.dimension_semantics<parallel>], iteration_bounds = array<i64: 1, 1>, scalar_prefetch = 0 : i64, scratch_operands = 0 : i64, tpu.core_type = #tpu.core_type<tc>, window_params = [{transform_indices = @transform_0, window_bounds = array<i64: 16, 32>}, {transform_indices = @transform_1, window_bounds = array<i64: 32, 96>}, {transform_indices = @transform_2, window_bounds = array<i64: 1, 96>}, {transform_indices = @transform_3, window_bounds = array<i64: 16, 96>}]} {
    %c0 = arith.constant 0 : index
    %c0_0 = arith.constant 0 : index
    %0 = vector.load %arg2[%c0, %c0_0] : memref<16x32xf32, #tpu.memory_space<vmem>>, vector<16x32xf32>
    %1 = arith.truncf %0 : vector<16x32xf32> to vector<16x32xbf16>
    %c0_1 = arith.constant 0 : index
    %c0_2 = arith.constant 0 : index
    %2 = vector.load %arg3[%c0_1, %c0_2] : memref<32x96xbf16, #tpu.memory_space<vmem>>, vector<32x96xbf16>
    %cst = arith.constant dense<0.000000e+00> : vector<16x96xf32>
    %3 = tpu.matmul %1, %2, %cst {dimension_numbers = #tpu.dot_dimension_numbers<[1], [0], [0], [1], [0, 0, 1, 1], [], []>} : vector<16x32xbf16>, vector<32x96xbf16>, vector<16x96xf32> -> vector<16x96xf32>
    %c0_3 = arith.constant 0 : index
    %c0_4 = arith.constant 0 : index
    %4 = vector.load %arg4[%c0_3, %c0_4] : memref<1x96xf32, #tpu.memory_space<vmem>>, vector<1x96xf32>
    %5 = vector.broadcast %4 : vector<1x96xf32> to vector<16x96xf32>
    %6 = arith.addf %3, %5 : vector<16x96xf32>
    %7 = arith.truncf %6 : vector<16x96xf32> to vector<16x96xbf16>
    %c0_5 = arith.constant 0 : index
    %c0_6 = arith.constant 0 : index
    %8 = vector.load %arg5[%c0_5, %c0_6] : memref<16x96xbf16, #tpu.memory_space<vmem>>, vector<16x96xbf16>
    tpu.vector_store %arg5[%c0_5, %c0_6], %7 {strides = array<i32>} : memref<16x96xbf16, #tpu.memory_space<vmem>>, vector<16x96xbf16>,
    return
  }
  func.func @transform_0(%arg0: i32, %arg1: i32) -> (i32, i32) {
    %c0_i32 = arith.constant 0 : i32
    %c0_i32_0 = arith.constant 0 : i32
    return %arg0, %c0_i32 : i32, i32
  }
  func.func @transform_1(%arg0: i32, %arg1: i32) -> (i32, i32) {
    %c0_i32 = arith.constant 0 : i32
    %c0_i32_0 = arith.constant 0 : i32
    return %c0_i32, %arg1 : i32, i32
  }
  func.func @transform_2(%arg0: i32, %arg1: i32) -> (i32, i32) {
    %c0_i32 = arith.constant 0 : i32
    %c0_i32_0 = arith.constant 0 : i32
    return %c0_i32, %arg1 : i32, i32
  }
  func.func @transform_3(%arg0: i32, %arg1: i32) -> (i32, i32) {
    %c0_i32 = arith.constant 0 : i32
    return %arg0, %arg1 : i32, i32
  }
}

</mosaic_0001>

<llo_original>
// kernel: tpu_custom_call.1
$region0: #{tpu_custom_call.1}
  #allocation0 [shape = 'u32[]', space=smem, size = 0x4, offset = 0x4, fixed_abs, tag = 'smem constant byte address 0x4 - core index']
  #allocation1 [shape = 'u32[72,128]{1,0:T(1,128)}', space=vmem, size = 0x9000, scoped, tag = 'internal scratch']
  %s0 = inlined_call_operand.hbm [shape: f32[16,32], index: 0, kind: input, shape index: {}]
  %s1 = inlined_call_operand.hbm [shape: bf16[32,96], index: 1, kind: input, shape index: {}]
  %s2 = inlined_call_operand.vmem [shape: f32[1,96], index: 2, kind: input, shape index: {}]
  %s3 = inlined_call_operand.hbm [shape: bf16[16,96], index: 3, kind: output, shape index: {}]
  %s4 = sld [smem:[#allocation0]]
  $region30: #{tpu_custom_call.1} parent=0
    _
  %s6 = ssub.s32 1, %s4
  %s7 = scalar_select 0, %s6, %s4
  $region1: #{tpu_custom_call.1} parent=0
    #allocation2 [shape = 'u8[8192]{0}', space=vmem, size = 0x2000, scoped, tag = 'input window, operand 0, single buffered']
    #allocation3 [shape = 's32[1]{0}', space=sflag, size = 0x4, scoped, tag = 'scoped memory for tpu_custom_call.1']
    #allocation4 [shape = 's32[1]{0}', space=sflag, size = 0x4, scoped, tag = 'scoped memory for tpu_custom_call.1']
    #allocation5 [shape = 'u8[8192]{0}', space=vmem, size = 0x2000, scoped, tag = 'input window, operand 1, single buffered']
    #allocation6 [shape = 's32[1]{0}', space=sflag, size = 0x4, scoped, tag = 'scoped memory for tpu_custom_call.1']
    #allocation7 [shape = 'u8[4096]{0}', space=vmem, size = 0x1000, scoped, tag = 'output window, operand 0, single buffered']
    %8 = vsyncpa [#allocation3], 0
    %9 = vsyncpa [#allocation6], 0
    %10 = vsyncpa [#allocation4], 0
    // Predicated region
    $region2: #{tpu_custom_call.1} parent=1 // pred_check
      _
    $region3: #{tpu_custom_call.1} parent=1 // pred_check_branch
      %12 = sbr.rel (0) target = $region5
    $region4: #{tpu_custom_call.1} parent=1 // pred_region
      %14 = vsyncadd [#allocation3], 0
      %s15 = sshll.u32 %s0, 4
      %s16 = int_to_ptr.hbm [resolvable:$true] %s15
      %s17 = sshll.u32 [#allocation2], 4
      %s18 = int_to_ptr.vmem [resolvable:$true] %s17
      %23 = dma.hbm_to_vmem [thread:$0]  %s16, 256, %s18, [#allocation3], 128, 128, 8
    $region5: #{tpu_custom_call.1} parent=1 // pred_fallthru
      _
    // Predicated region
    $region6: #{tpu_custom_call.1} parent=1 // pred_check
      _
    $region7: #{tpu_custom_call.1} parent=1 // pred_check_branch
      %25 = sbr.rel (0) target = $region9
    $region8: #{tpu_custom_call.1} parent=1 // pred_region
      %27 = vsyncadd [#allocation6], 0
      %s28 = sshll.u32 %s1, 4
      %s29 = int_to_ptr.hbm [resolvable:$true] %s28
      %s30 = sshll.u32 [#allocation5], 4
      %s31 = int_to_ptr.vmem [resolvable:$true] %s30
      %36 = dma.hbm_to_vmem [thread:$0]  %s29, 256, %s31, [#allocation6], 64, 64, 4
    $region9: #{tpu_custom_call.1} parent=1 // pred_fallthru
      _
    // Predicated region
    $region10: #{tpu_custom_call.1} parent=1 // pred_check
      _
    $region11: #{tpu_custom_call.1} parent=1 // pred_check_branch
      %38 = sbr.rel (0) target = $region13
    $region12: #{tpu_custom_call.1} parent=1 // pred_region
      _
    $region13: #{tpu_custom_call.1} parent=1 // pred_fallthru
      _
    // Predicated region
    $region14: #{tpu_custom_call.1} parent=1 // pred_check
      _
    $region15: #{tpu_custom_call.1} parent=1 // pred_check_branch
      %40 = sbr.rel (0) target = $region17
    $region16: #{tpu_custom_call.1} parent=1 // pred_region
      %42 = dma.done [#allocation3], 256
    $region17: #{tpu_custom_call.1} parent=1 // pred_fallthru
      _
    // Predicated region
    $region18: #{tpu_custom_call.1} parent=1 // pred_check
      _
    $region19: #{tpu_custom_call.1} parent=1 // pred_check_branch
      %44 = sbr.rel (0) target = $region21
    $region20: #{tpu_custom_call.1} parent=1 // pred_region
      %46 = dma.done [#allocation6], 256
    $region21: #{tpu_custom_call.1} parent=1 // pred_fallthru
      _
    %v48 = vld [vmem:[#allocation2] sm:$0xff]
    %v49 = vld [vmem:[#allocation2 + $0x8] sm:$0xff]
    %v50 = vpack.c.bf16 %v49, %v48
    %v51 = vld [vmem:[#allocation5] sm:$0xf]
    %v52 = vld [vmem:[#allocation5 + $0x4] sm:$0xf]
    %v53 = vld [vmem:[#allocation5 + $0x8] sm:$0xf]
    %v54 = vld [vmem:[#allocation5 + $0xc] sm:$0xf]
    %v55 = vld [vmem:[%s2] sm:$0x1]
    %v57 = vperm.slane %v55, 0
    %v63 = vunpack.c.l.b16 %v51
    %v64 = vunpack.c.l.b16 %v52
    %v65 = vunpack.c.l.b16 %v53
    %v66 = vunpack.c.l.b16 %v54
    %v67 = vpack.c.b16 %v64, %v63
    %v68 = vpack.c.b16 %v66, %v65
    %vm71 = vcmask 261120
    %v73 = vsel %vm71, %v50, 0
    %75 = vmatpush.bf16.msra.mxu0 0
    %76 = vmatpush.bf16.msra.mxu0 0
    %77 = vmatpush.bf16.msra.mxu0 0
    %78 = vmatpush.bf16.msra.mxu0 0
    %79 = vmatpush.bf16.msra.mxu0 0
    %80 = vmatpush.bf16.msra.mxu0 0
    %81 = vmatpush.bf16.msra.mxu0 %v68
    %82 = vmatpush.bf16.msra.mxu0 %v67
    %83 = vmatmul.bf16.gmra.mxu0 %v73
    %v84 = vpop.f32.mrf.mxu0
    %v85 = vadd.f32 %v57, %v84
    %v86 = vpop.f32.mrf.mxu0
    %v87 = vadd.f32 %v57, %v86
    %88 = vdwg.mxu0
    %v89 = vpack.c.bf16 %v85, %v85
    %v90 = vpack.c.bf16 %v87, %v87
    %vm91 = vcmask 781312
    %92 = vst.msk [vmem:[#allocation7] sm:$0xf] %vm91, %v89
    %93 = vst.msk [vmem:[#allocation7 + $0x4] sm:$0xf] %vm91, %v90
    // Predicated region
    $region22: #{tpu_custom_call.1} parent=1 // pred_check
      _
    $region23: #{tpu_custom_call.1} parent=1 // pred_check_branch
      %95 = sbr.rel (0) target = $region25
    $region24: #{tpu_custom_call.1} parent=1 // pred_region
      %97 = vsyncadd [#allocation4], 0
      %s98 = sshll.u32 [#allocation7], 4
      %s99 = int_to_ptr.vmem [resolvable:$true] %s98
      %s100 = sshll.u32 %s3, 4
      %s101 = int_to_ptr.hbm [resolvable:$true] %s100
      %106 = dma.vmem_to_hbm [thread:$0]  %s99, 128, %s101, [#allocation4], 64, 64, 4
    $region25: #{tpu_custom_call.1} parent=1 // pred_fallthru
      _
    // Predicated region
    $region26: #{tpu_custom_call.1} parent=1 // pred_check
      _
    $region27: #{tpu_custom_call.1} parent=1 // pred_check_branch
      %108 = sbr.rel (0) target = $region29
    $region28: #{tpu_custom_call.1} parent=1 // pred_region
      %110 = dma.done [#allocation4], 128
    $region29: #{tpu_custom_call.1} parent=1 // pred_fallthru
      _
    %111 = vsyncpa [#allocation3], 1
    %112 = vsyncpa [#allocation6], 1
    %113 = vsyncpa [#allocation4], 1

</llo_original>
